<compile_context>
chip_gen: v7x
topology: tpu7x:2x2x1
jax: 0.10.0
libtpu: 0.0.40
codegen_flags: <defaults>
</compile_context>

<pallas_src>
import jax
import jax.numpy as jnp
from jax.experimental import pallas as pl
from jax.experimental.pallas import tpu as pltpu

P1 = 21
P2 = 21
PATCH = P1 * P2            # 441 == LocalDown's LayerNorm width
_INV_SQRT2 = 0.7071067811865476
_LN_EPS = 1e-6

_MIB = 1024 * 1024
_VMEM_TARGET = 24 * _MIB        # soft cap on the estimated VMEM working set
_VMEM_LIMIT_CAP = 48 * _MIB     # hard cap for vmem_limit_bytes (v7x: 64 MiB/TC)
_VMEM_LIMIT_FLOOR = 16 * _MIB


# ---------------------------------------------------------------------------
# Kernels
# ---------------------------------------------------------------------------
def _flat_kernel(x_ref, mix_ref, g_ref, b_ref, o_ref):
    """Small-S path: one (C*S, PATCH) slab per batch.

    The 1x1 conv becomes a single row-mix matmul with kron(W, I_S) on the MXU
    (vector-extended slot), freeing VALU slots for LN + erf-GELU.
    """
    x = x_ref[...].astype(jnp.float32)
    # conv bias omitted: constant along PATCH -> cancelled by the LN mean.
    y = jnp.dot(mix_ref[...], x, preferred_element_type=jnp.float32)
    mean = jnp.mean(y, axis=-1, keepdims=True)
    d = y - mean
    var = jnp.mean(d * d, axis=-1, keepdims=True)
    yn = d * jax.lax.rsqrt(var + _LN_EPS)
    yn = yn * g_ref[...].astype(jnp.float32) + b_ref[...].astype(jnp.float32)
    # exact erf-GELU (PyTorch nn.GELU default)
    o_ref[...] = (0.5 * yn * (1.0 + jax.lax.erf(yn * _INV_SQRT2))).astype(o_ref.dtype)


def _make_fma_kernel(C, s_tile):
    """Larger-S path: (C, s_tile, PATCH) block, streamed channel-mix FMAs."""

    def kernel(x_ref, w_ref, g_ref, b_ref, o_ref):
        # x_ref: (C, s_tile, PATCH) VMEM   w_ref: (C, C) SMEM scalars
        # g_ref/b_ref: (1, PATCH) VMEM     o_ref: (C, s_tile, PATCH)
        # Hoist gamma/beta casts + broadcasts out of the channel loop
        # (JAX does not CSE broadcast_in_dim).
        gb = jnp.broadcast_to(g_ref[...].astype(jnp.float32), (s_tile, PATCH))
        bb = jnp.broadcast_to(b_ref[...].astype(jnp.float32), (s_tile, PATCH))
        for o in range(C):
            # Stream input channels: re-read x_ref[i] per output channel
            # instead of holding C f32 copies live (VMEM pressure).
            y = w_ref[o, 0] * x_ref[0].astype(jnp.float32)
            for i in range(1, C):
                y = y + w_ref[o, i] * x_ref[i].astype(jnp.float32)
            mean = jnp.mean(y, axis=-1, keepdims=True)
            d = y - mean
            var = jnp.mean(d * d, axis=-1, keepdims=True)
            yn = d * jax.lax.rsqrt(var + _LN_EPS) * gb + bb
            o_ref[o] = (0.5 * yn * (1.0 + jax.lax.erf(yn * _INV_SQRT2))).astype(o_ref.dtype)

    return kernel


# ---------------------------------------------------------------------------
# VMEM budgeting / tile selection
# ---------------------------------------------------------------------------
def _flat_estimate(rows, in_isz, out_isz):
    blk_in = rows * PATCH * in_isz
    blk_out = rows * PATCH * out_isz
    mix = rows * rows * 4
    temps = 4 * rows * PATCH * 4          # f32 temporaries of the LN/GELU chain
    return 2 * blk_in + 2 * blk_out + 2 * mix + temps + 4 * PATCH * 4


def _tiled_estimate(C, s_tile, in_isz, out_isz):
    blk_in = C * s_tile * PATCH * in_isz
    blk_out = C * s_tile * PATCH * out_isz
    temps = 6 * s_tile * PATCH * 4        # per-channel f32 temps + hoisted gamma/beta
    return 2 * blk_in + 2 * blk_out + temps + 4 * PATCH * 4


def _vmem_limit(est):
    return int(min(_VMEM_LIMIT_CAP, max(_VMEM_LIMIT_FLOOR, (3 * est) // 2)))


def _choose_s_tile(B, S, C, in_isz, out_isz, target):
    """Legal tiles only: full S extent, or a multiple of 8 that divides S."""
    cands = {S} | {t for t in range(8, S + 1, 8) if S % t == 0}
    cands = sorted(cands, reverse=True)
    fitting = [t for t in cands if _tiled_estimate(C, t, in_isz, out_isz) <= target]
    if fitting:
        s_tile = fitting[0]
    else:
        # Nothing fits the soft target: smallest legal tile + capped vmem limit.
        s_tile = min(cands, key=lambda t: _tiled_estimate(C, t, in_isz, out_isz))
    # v7x occupancy: 2 TensorCores/chip -> prefer >= 4 parallel grid steps when a
    # smaller (still legal, still fitting) tile is available.
    if B * (S // s_tile) < 4:
        pool = fitting if fitting else cands
        smaller = [t for t in pool if t < s_tile and t >= 8 and B * (S // t) >= 4]
        if smaller:
            s_tile = max(smaller)
    return s_tile


# ---------------------------------------------------------------------------
# Wrapper
# ---------------------------------------------------------------------------
def local_down_forward(x, x_t, conv_w, conv_b, ln_gamma, ln_beta, *, io_dtype=None):
    """x: (B, C, H, W) NCHW with H % 21 == 0 and W % 21 == 0.  x_t is unused.

    io_dtype: optionally cast HBM I/O (e.g. jnp.bfloat16 on v6e/v7x) to halve
    memory traffic; in-kernel compute stays f32.  Default keeps x.dtype.
    """
    del x_t            # unused by LocalDown.forward
    del conv_b         # constant along the LN axis -> cancelled by the LN mean
    B, C, H, W = x.shape
    assert H % P1 == 0 and W % P2 == 0
    h, w = H // P1, W // P2
    S = h * w
    R = C * S

    if io_dtype is not None:
        x = x.astype(io_dtype)     # cast BEFORE the rearrange: halves that pass too
    out_dtype = x.dtype
    in_isz = jnp.dtype(x.dtype).itemsize
    out_isz = jnp.dtype(out_dtype).itemsize

    # Single layout pass = the module's einops Rearrange (C kept leading so the
    # 1x1 conv can be fused in the kernel):  b c (h p1) (w p2) -> b c (h w) (p1 p2)
    x_r = x.reshape(B, C, h, P1, w, P2)
    x_r = jnp.transpose(x_r, (0, 1, 2, 4, 3, 5)).reshape(B, C, S, PATCH)

    w2 = conv_w.reshape(C, C).astype(jnp.float32)
    g2 = ln_gamma.reshape(1, PATCH).astype(jnp.float32)
    b2 = ln_beta.reshape(1, PATCH).astype(jnp.float32)

    flat_est = _flat_estimate(R, in_isz, out_isz)
    if S <= 8 and R <= 1024 and flat_est <= _VMEM_TARGET:
        # ---- Small-S path: dense (C*S, PATCH) slab per batch, MXU channel mix.
        x_flat = x_r.reshape(B, R, PATCH)              # contiguous, free
        mix = jnp.kron(w2, jnp.eye(S, dtype=jnp.float32))   # (R, R)
        out = pl.pallas_call(
            _flat_kernel,
            out_shape=jax.ShapeDtypeStruct((B, R, PATCH), out_dtype),
            grid=(B,),
            in_specs=[
                pl.BlockSpec((None, R, PATCH), lambda b: (b, 0, 0)),
                pl.BlockSpec((R, R), lambda b: (0, 0)),
                pl.BlockSpec((1, PATCH), lambda b: (0, 0)),
                pl.BlockSpec((1, PATCH), lambda b: (0, 0)),
            ],
            out_specs=pl.BlockSpec((None, R, PATCH), lambda b: (b, 0, 0)),
            compiler_params=pltpu.CompilerParams(
                dimension_semantics=("parallel",),
                vmem_limit_bytes=_vmem_limit(flat_est)),
        )(x_flat, mix, g2, b2)
        # already PyTorch row order 'b (c h w) (p1 p2)'
        return out

    # ---- Larger-S path: (B, C, s_tile, PATCH) blocks, streamed FMA channel mix.
    s_tile = _choose_s_tile(B, S, C, in_isz, out_isz, _VMEM_TARGET)
    est = _tiled_estimate(C, s_tile, in_isz, out_isz)
    blk = (None, C, s_tile, PATCH)
    out4 = pl.pallas_call(
        _make_fma_kernel(C, s_tile),
        out_shape=jax.ShapeDtypeStruct((B, C, S, PATCH), out_dtype),
        grid=(B, S // s_tile),
        in_specs=[
            pl.BlockSpec(blk, lambda b, s: (b, 0, s, 0)),
            pl.BlockSpec(memory_space=pltpu.MemorySpace.SMEM),   # (C, C) weights
            pl.BlockSpec((1, PATCH), lambda b, s: (0, 0)),
            pl.BlockSpec((1, PATCH), lambda b, s: (0, 0)),
        ],
        out_specs=pl.BlockSpec(blk, lambda b, s: (b, 0, s, 0)),
        compiler_params=pltpu.CompilerParams(
            dimension_semantics=("parallel", "parallel"),
            vmem_limit_bytes=_vmem_limit(est)),
    )(x_r, w2, g2, b2)
    # (B, C, S, PATCH) is already PyTorch row order: the reshape is contiguous/free.
    return out4.reshape(B, R, PATCH)


# ---------------------------------------------------------------------------
# Pure-JAX reference (includes the conv bias) and test
# ---------------------------------------------------------------------------
def _reference(x, conv_w, conv_b, ln_gamma, ln_beta):
    B, C, H, W = x.shape
    h, w = H // P1, W // P2
    y = jnp.einsum("oc,bchw->bohw", conv_w.reshape(C, C), x) + conv_b[None, :, None, None]
    y = y.reshape(B, C, h, P1, w, P2).transpose(0, 1, 2, 4, 3, 5).reshape(B, C * h * w, PATCH)
    mean = jnp.mean(y, axis=-1, keepdims=True)
    var = jnp.mean((y - mean) ** 2, axis=-1, keepdims=True)
    yn = (y - mean) / jnp.sqrt(var + _LN_EPS) * ln_gamma + ln_beta
    return 0.5 * yn * (1.0 + jax.lax.erf(yn * _INV_SQRT2))


if __name__ == "__main__":
    key = jax.random.PRNGKey(0)

    def run_case(k, B, C, H, W):
        k1, k2, k3, k4, k5, k6 = jax.random.split(k, 6)
        x = jax.random.normal(k1, (B, C, H, W), dtype=jnp.float32)
        x_t = jax.random.normal(k2, (B, 16, PATCH), dtype=jnp.float32)  # unused by forward
        conv_w = 0.3 * jax.random.normal(k3, (C, C, 1, 1), dtype=jnp.float32)
        conv_b = 0.1 * jax.random.normal(k4, (C,), dtype=jnp.float32)
        ln_gamma = 1.0 + 0.05 * jax.random.normal(k5, (PATCH,), dtype=jnp.float32)
        ln_beta = 0.05 * jax.random.normal(k6, (PATCH,), dtype=jnp.float32)

        out = local_down_forward(x, x_t, conv_w, conv_b, ln_gamma, ln_beta)
        out = jax.block_until_ready(out)

        S = (H // P1) * (W // P2)
        ref = _reference(x, conv_w, conv_b, ln_gamma, ln_beta)
        assert out.shape == (B, C * S, PATCH), out.shape
        err = float(jnp.max(jnp.abs(out - ref)))
        assert jnp.allclose(out, ref, atol=2e-3, rtol=2e-3), err

    k_a, k_b = jax.random.split(key)
    # Path A (small S, dense slab + MXU kron mix): inplanes = outplanes//4 = 4,
    # embed_dim = 441, spatial = 42 (2x2 patches of 21x21 -> S = 4).
    run_case(k_a, B=2, C=4, H=42, W=42)
    # Path B (tiled S, streamed FMA mix): spatial = 84 -> S = 16, s_tile = 8,
    # grid (2, 2) so both v7x TensorCores get work.
    run_case(k_b, B=2, C=4, H=84, W=84)

    print("KERNEL_OK")
</pallas_src>

<mosaic_0001>
module attributes {stable_mosaic.version = 11 : i64} {
  func.func @_flat_kernel(%arg0: i32, %arg1: memref<1x16x441xf32, #tpu.memory_space<vmem>>, %arg2: memref<16x16xf32, #tpu.memory_space<vmem>>, %arg3: memref<1x441xf32, #tpu.memory_space<vmem>>, %arg4: memref<1x441xf32, #tpu.memory_space<vmem>>, %arg5: memref<1x16x441xf32, #tpu.memory_space<vmem>>) attributes {dimension_semantics = [#tpu.dimension_semantics<parallel>], iteration_bounds = array<i64: 2>, scalar_prefetch = 0 : i64, scratch_operands = 0 : i64, tpu.core_type = #tpu.core_type<tc>, window_params = [{transform_indices = @transform_0, window_bounds = array<i64: 1, 16, 441>}, {pipeline_mode = #tpu.pipeline_mode<synchronous>, transform_indices = @transform_1, window_bounds = array<i64: 16, 16>}, {pipeline_mode = #tpu.pipeline_mode<synchronous>, transform_indices = @transform_2, window_bounds = array<i64: 1, 441>}, {pipeline_mode = #tpu.pipeline_mode<synchronous>, transform_indices = @transform_3, window_bounds = array<i64: 1, 441>}, {transform_indices = @transform_4, window_bounds = array<i64: 1, 16, 441>}]} {
    %c0 = arith.constant 0 : index
    %c0_0 = arith.constant 0 : index
    %c0_1 = arith.constant 0 : index
    %0 = vector.load %arg1[%c0, %c0_0, %c0_1] : memref<1x16x441xf32, #tpu.memory_space<vmem>>, vector<1x16x441xf32>
    %1 = vector.shape_cast %0 : vector<1x16x441xf32> to vector<16x441xf32>
    %c0_2 = arith.constant 0 : index
    %c0_3 = arith.constant 0 : index
    %2 = vector.load %arg2[%c0_2, %c0_3] : memref<16x16xf32, #tpu.memory_space<vmem>>, vector<16x16xf32>
    %cst = arith.constant dense<0.000000e+00> : vector<16x441xf32>
    %3 = tpu.matmul %2, %1, %cst {dimension_numbers = #tpu.dot_dimension_numbers<[1], [0], [0], [1], [0, 0, 1, 1], [], []>} : vector<16x16xf32>, vector<16x441xf32>, vector<16x441xf32> -> vector<16x441xf32>
    %cst_4 = arith.constant dense<0.000000e+00> : vector<16xf32>
    %4 = vector.multi_reduction <add>, %3, %cst_4 [1] : vector<16x441xf32> to vector<16xf32>
    %5 = vector.shape_cast %4 : vector<16xf32> to vector<16x1xf32>
    %cst_5 = arith.constant 4.410000e+02 : f32
    %6 = vector.broadcast %cst_5 : f32 to vector<16x1xf32>
    %7 = arith.divf %5, %6 : vector<16x1xf32>
    %8 = vector.broadcast %7 : vector<16x1xf32> to vector<16x441xf32>
    %9 = arith.subf %3, %8 : vector<16x441xf32>
    %10 = arith.mulf %9, %9 : vector<16x441xf32>
    %cst_6 = arith.constant dense<0.000000e+00> : vector<16xf32>
    %11 = vector.multi_reduction <add>, %10, %cst_6 [1] : vector<16x441xf32> to vector<16xf32>
    %12 = vector.shape_cast %11 : vector<16xf32> to vector<16x1xf32>
    %cst_7 = arith.constant 4.410000e+02 : f32
    %13 = vector.broadcast %cst_7 : f32 to vector<16x1xf32>
    %14 = arith.divf %12, %13 : vector<16x1xf32>
    %cst_8 = arith.constant 9.99999997E-7 : f32
    %15 = vector.broadcast %cst_8 : f32 to vector<16x1xf32>
    %16 = arith.addf %14, %15 : vector<16x1xf32>
    %17 = math.rsqrt %16 : vector<16x1xf32>
    %18 = vector.broadcast %17 : vector<16x1xf32> to vector<16x441xf32>
    %19 = arith.mulf %9, %18 : vector<16x441xf32>
    %c0_9 = arith.constant 0 : index
    %c0_10 = arith.constant 0 : index
    %20 = vector.load %arg3[%c0_9, %c0_10] : memref<1x441xf32, #tpu.memory_space<vmem>>, vector<1x441xf32>
    %21 = vector.broadcast %20 : vector<1x441xf32> to vector<16x441xf32>
    %22 = arith.mulf %19, %21 : vector<16x441xf32>
    %c0_11 = arith.constant 0 : index
    %c0_12 = arith.constant 0 : index
    %23 = vector.load %arg4[%c0_11, %c0_12] : memref<1x441xf32, #tpu.memory_space<vmem>>, vector<1x441xf32>
    %24 = vector.broadcast %23 : vector<1x441xf32> to vector<16x441xf32>
    %25 = arith.addf %22, %24 : vector<16x441xf32>
    %cst_13 = arith.constant 5.000000e-01 : f32
    %26 = vector.broadcast %cst_13 : f32 to vector<16x441xf32>
    %27 = arith.mulf %26, %25 : vector<16x441xf32>
    %cst_14 = arith.constant 0.707106769 : f32
    %28 = vector.broadcast %cst_14 : f32 to vector<16x441xf32>
    %29 = arith.mulf %25, %28 : vector<16x441xf32>
    %30 = math.erf %29 : vector<16x441xf32>
    %cst_15 = arith.constant 1.000000e+00 : f32
    %31 = vector.broadcast %cst_15 : f32 to vector<16x441xf32>
    %32 = arith.addf %31, %30 : vector<16x441xf32>
    %33 = arith.mulf %27, %32 : vector<16x441xf32>
    %c0_16 = arith.constant 0 : index
    %c0_17 = arith.constant 0 : index
    %c0_18 = arith.constant 0 : index
    %34 = vector.load %arg5[%c0_16, %c0_17, %c0_18] : memref<1x16x441xf32, #tpu.memory_space<vmem>>, vector<1x16x441xf32>
    %35 = vector.shape_cast %34 : vector<1x16x441xf32> to vector<16x441xf32>
    %36 = vector.shape_cast %33 : vector<16x441xf32> to vector<1x16x441xf32>
    tpu.vector_store %arg5[%c0_16, %c0_17, %c0_18], %36 {strides = array<i32>} : memref<1x16x441xf32, #tpu.memory_space<vmem>>, vector<1x16x441xf32>,
    return
  }
  func.func @transform_0(%arg0: i32) -> (i32, i32, i32) {
    %c0_i32 = arith.constant 0 : i32
    %c0_i32_0 = arith.constant 0 : i32
    %c0_i32_1 = arith.constant 0 : i32
    return %arg0, %c0_i32, %c0_i32_0 : i32, i32, i32
  }
  func.func @transform_1(%arg0: i32) -> (i32, i32) {
    %c0_i32 = arith.constant 0 : i32
    %c0_i32_0 = arith.constant 0 : i32
    %c0_i32_1 = arith.constant 0 : i32
    return %c0_i32, %c0_i32_0 : i32, i32
  }
  func.func @transform_2(%arg0: i32) -> (i32, i32) {
    %c0_i32 = arith.constant 0 : i32
    %c0_i32_0 = arith.constant 0 : i32
    %c0_i32_1 = arith.constant 0 : i32
    return %c0_i32, %c0_i32_0 : i32, i32
  }
  func.func @transform_3(%arg0: i32) -> (i32, i32) {
    %c0_i32 = arith.constant 0 : i32
    %c0_i32_0 = arith.constant 0 : i32
    %c0_i32_1 = arith.constant 0 : i32
    return %c0_i32, %c0_i32_0 : i32, i32
  }
  func.func @transform_4(%arg0: i32) -> (i32, i32, i32) {
    %c0_i32 = arith.constant 0 : i32
    %c0_i32_0 = arith.constant 0 : i32
    %c0_i32_1 = arith.constant 0 : i32
    return %arg0, %c0_i32, %c0_i32_0 : i32, i32, i32
  }
}

</mosaic_0001>

<llo_original>
// kernel: tpu_custom_call.1
$region0: #{tpu_custom_call.1}
  #allocation0 [shape = 'u32[]', space=smem, size = 0x4, offset = 0x4, fixed_abs, tag = 'smem constant byte address 0x4 - core index']
  #allocation1 [shape = 'u32[144,128]{1,0:T(1,128)}', space=vmem, size = 0x12000, scoped, tag = 'internal scratch']
  %s0 = inlined_call_operand.hbm [shape: f32[2,16,441], index: 0, kind: input, shape index: {}]
  %s1 = inlined_call_operand.hbm [shape: f32[16,16], index: 1, kind: input, shape index: {}]
  %s2 = inlined_call_operand.vmem [shape: f32[1,441], index: 2, kind: input, shape index: {}]
  %s3 = inlined_call_operand.vmem [shape: f32[1,441], index: 3, kind: input, shape index: {}]
  %s4 = inlined_call_operand.hbm [shape: f32[2,16,441], index: 4, kind: output, shape index: {}]
  %s5 = sld [smem:[#allocation0]]
  $region57: #{tpu_custom_call.1} parent=0
    _
  %s7 = ssub.s32 1, %s5
  %s8 = scalar_select 0, %s7, %s5
  $region1: #{tpu_custom_call.1} parent=0
    #allocation2 [shape = 'u8[65536]{0}', space=vmem, size = 0x10000, scoped, tag = 'input window, operand 0']
    #allocation3 [shape = 's32[2]{0}', space=sflag, size = 0x8, scoped, tag = 'scoped memory for tpu_custom_call.1']
    #allocation4 [shape = 's32[2]{0}', space=sflag, size = 0x8, scoped, tag = 'scoped memory for tpu_custom_call.1']
    #allocation5 [shape = 'u8[8192]{0}', space=vmem, size = 0x2000, scoped, tag = 'input window, operand 1, single buffered']
    #allocation6 [shape = 's32[1]{0}', space=sflag, size = 0x4, scoped, tag = 'scoped memory for tpu_custom_call.1']
    #allocation7 [shape = 'u8[65536]{0}', space=vmem, size = 0x10000, scoped, tag = 'output window, operand 0']
    %9 = vsyncpa [#allocation3], 0
    %s10 = scalar_lea.sflag [#allocation3], 1
    %11 = vsyncpa %s10, 0
    %12 = vsyncpa [#allocation6], 0
    %13 = vsyncpa [#allocation4], 0
    %s14 = scalar_lea.sflag [#allocation4], 1
    %15 = vsyncpa %s14, 0
    loop: start=0, step=1, limit=4
    $region2: #{tpu_custom_call.1} parent=1 // loop_pre_header
      _
    $region3: #{tpu_custom_call.1} parent=1 // loop_header
      %s17 = sphi 0, %s21
      %p18 = scmp.ge.s32.totalorder %s17, 4
      %s27 = sphi 0, %s29
      %s30 = sphi 0, %s27
      %s31 = sphi 0, %s30
      %s47 = sphi 0, %s31
      %s51 = sphi 0, %s51
      %s53 = sphi 0, %s51
      %s54 = sphi 0, %s53
      %s68 = sphi 0, %s54
      %s72 = sphi 0, %s72
      %s74 = sphi 0, %s72
      %s75 = sphi 0, %s74
      %s89 = sphi 0, %s75
      %s93 = sphi 0, %s93
      %s95 = sphi 0, %s93
      %s96 = sphi 0, %s95
      %s110 = sphi 0, %s96
      %s116 = sphi 0, %s118
      %s119 = sphi 0, %s116
      %s120 = sphi 0, %s119
      %s136 = sphi 0, %s120
    $region4: #{tpu_custom_call.1} parent=1 // loop_header_branch
      %20 = sbr.rel (%p18) target = $region8
    $region5: #{tpu_custom_call.1} parent=1 // loop_body
      %s22 = ssub.s32 %s17, 1
      %s23 = ssub.s32 %s17, 2
      %s24 = sadd.s32 %s17, 1
      %s25 = ssub.s32 %s17, %s24
      %p26 = scmp.eq.s32.totalorder %s25, 0
      %s28 = sadd.s32 %s27, 1
      %s29 = scalar_select %p26, %s27, %s28
      %p32 = pneg %p26
      %p33 = scmp.eq.s32.totalorder %s17, 1
      %p34 = por %p32, %p33
      %p35 = scmp.ne.s32.totalorder %s27, %s30
      %p36 = scmp.eq.s32.totalorder %s17, 0
      %p37 = por %p35, %p36
      %p38 = scmp.ne.s32.totalorder %s27, %s30
      %p39 = scmp.eq.s32.totalorder %s22, 1
      %p40 = por %p38, %p39
      %p41 = scmp.ne.s32.totalorder %s30, %s31
      %p42 = scmp.eq.s32.totalorder %s22, 0
      %p43 = por %p41, %p42
      %p44 = scmp.ne.s32.totalorder %s30, %s31
      %p45 = scmp.eq.s32.totalorder %s23, 1
      %p46 = por %p44, %p45
      %p48 = scmp.ne.s32.totalorder %s31, %s47
      %p49 = scmp.eq.s32.totalorder %s23, 0
      %p50 = por %p48, %p49
      %s52 = sadd.s32 %s51, 1
      %p55 = scmp.eq.s32.totalorder %s17, 1
      %p56 = scmp.ne.s32.totalorder %s51, %s53
      %p57 = scmp.eq.s32.totalorder %s17, 0
      %p58 = por %p56, %p57
      %p59 = scmp.ne.s32.totalorder %s51, %s53
      %p60 = scmp.eq.s32.totalorder %s22, 1
      %p61 = por %p59, %p60
      %p62 = scmp.ne.s32.totalorder %s53, %s54
      %p63 = scmp.eq.s32.totalorder %s22, 0
      %p64 = por %p62, %p63
      %p65 = scmp.ne.s32.totalorder %s53, %s54
      %p66 = scmp.eq.s32.totalorder %s23, 1
      %p67 = por %p65, %p66
      %p69 = scmp.ne.s32.totalorder %s54, %s68
      %p70 = scmp.eq.s32.totalorder %s23, 0
      %p71 = por %p69, %p70
      %s73 = sadd.s32 %s72, 1
      %p76 = scmp.eq.s32.totalorder %s17, 1
      %p77 = scmp.ne.s32.totalorder %s72, %s74
      %p78 = scmp.eq.s32.totalorder %s17, 0
      %p79 = por %p77, %p78
      %p80 = scmp.ne.s32.totalorder %s72, %s74
      %p81 = scmp.eq.s32.totalorder %s22, 1
      %p82 = por %p80, %p81
      %p83 = scmp.ne.s32.totalorder %s74, %s75
      %p84 = scmp.eq.s32.totalorder %s22, 0
      %p85 = por %p83, %p84
      %p86 = scmp.ne.s32.totalorder %s74, %s75
      %p87 = scmp.eq.s32.totalorder %s23, 1
      %p88 = por %p86, %p87
      %p90 = scmp.ne.s32.totalorder %s75, %s89
      %p91 = scmp.eq.s32.totalorder %s23, 0
      %p92 = por %p90, %p91
      %s94 = sadd.s32 %s93, 1
      %p97 = scmp.eq.s32.totalorder %s17, 1
      %p98 = scmp.ne.s32.totalorder %s93, %s95
      %p99 = scmp.eq.s32.totalorder %s17, 0
      %p100 = por %p98, %p99
      %p101 = scmp.ne.s32.totalorder %s93, %s95
      %p102 = scmp.eq.s32.totalorder %s22, 1
      %p103 = por %p101, %p102
      %p104 = scmp.ne.s32.totalorder %s95, %s96
      %p105 = scmp.eq.s32.totalorder %s22, 0
      %p106 = por %p104, %p105
      %p107 = scmp.ne.s32.totalorder %s95, %s96
      %p108 = scmp.eq.s32.totalorder %s23, 1
      %p109 = por %p107, %p108
      %p111 = scmp.ne.s32.totalorder %s96, %s110
      %p112 = scmp.eq.s32.totalorder %s23, 0
      %p113 = por %p111, %p112
      %s114 = ssub.s32 %s17, %s24
      %p115 = scmp.eq.s32.totalorder %s114, 0
      %s117 = sadd.s32 %s116, 1
      %s118 = scalar_select %p115, %s116, %s117
      %p121 = pneg %p115
      %p122 = scmp.eq.s32.totalorder %s17, 1
      %p123 = por %p121, %p122
      %p124 = scmp.ne.s32.totalorder %s116, %s119
      %p125 = scmp.eq.s32.totalorder %s17, 0
      %p126 = por %p124, %p125
      %p127 = scmp.ne.s32.totalorder %s116, %s119
      %p128 = scmp.eq.s32.totalorder %s22, 1
      %p129 = por %p127, %p128
      %p130 = scmp.ne.s32.totalorder %s119, %s120
      %p131 = scmp.eq.s32.totalorder %s22, 0
      %p132 = por %p130, %p131
      %p133 = scmp.ne.s32.totalorder %s119, %s120
      %p134 = scmp.eq.s32.totalorder %s23, 1
      %p135 = por %p133, %p134
      %p137 = scmp.ne.s32.totalorder %s120, %s136
      %p138 = scmp.eq.s32.totalorder %s23, 0
      %p139 = por %p137, %p138
      %p140 = scmp.le.s32.totalorder 1, %s17
      %p141 = scmp.lt.s32.totalorder %s17, 3
      %p142 = pnand %p140, %p141
      %p143 = pneg %p142
      // Predicated region
      $region9: #{tpu_custom_call.1} parent=5 // pred_check
        _
      $region10: #{tpu_custom_call.1} parent=5 // pred_check_branch
        %145 = sbr.rel (%p142) target = $region12
      $region11: #{tpu_custom_call.1} parent=5 // pred_region
        %s146 = ssub.s32 %s17, 1
        // Predicated region
        $region13: #{tpu_custom_call.1} parent=11 // pred_check
          %p147 = pneg %p64
        $region14: #{tpu_custom_call.1} parent=11 // pred_check_branch
          %149 = sbr.rel (%p147) target = $region16
        $region15: #{tpu_custom_call.1} parent=11 // pred_region
          %s151 = ssub.s32 256, 256
          %152 = vsyncadd [#allocation6], %s151
          %s153 = sshll.u32 [#allocation5], 4
          %s154 = int_to_ptr.vmem [resolvable:$true] %s153
          %159 = dma.hbm_to_vmem [thread:$0]  %s1, 256, %s154, [#allocation6], 128, 128, 8
        $region16: #{tpu_custom_call.1} parent=11 // pred_fallthru
          _
        // Predicated region
        $region17: #{tpu_custom_call.1} parent=11 // pred_check
          %p160 = pneg %p85
        $region18: #{tpu_custom_call.1} parent=11 // pred_check_branch
          %162 = sbr.rel (%p160) target = $region20
        $region19: #{tpu_custom_call.1} parent=11 // pred_region
          _
        $region20: #{tpu_custom_call.1} parent=11 // pred_fallthru
          _
        // Predicated region
        $region21: #{tpu_custom_call.1} parent=11 // pred_check
          %p163 = pneg %p106
        $region22: #{tpu_custom_call.1} parent=11 // pred_check_branch
          %165 = sbr.rel (%p163) target = $region24
        $region23: #{tpu_custom_call.1} parent=11 // pred_region
          _
        $region24: #{tpu_custom_call.1} parent=11 // pred_fallthru
          _
      $region12: #{tpu_custom_call.1} parent=5 // pred_fallthru
        _
      %p166 = scmp.lt.s32.totalorder %s17, 2
      // Predicated region
      $region25: #{tpu_custom_call.1} parent=5 // pred_check
        %p167 = pneg %p166
      $region26: #{tpu_custom_call.1} parent=5 // pred_check_branch
        %169 = sbr.rel (%p167) target = $region28
      $region27: #{tpu_custom_call.1} parent=5 // pred_region
        // Predicated region
        $region29: #{tpu_custom_call.1} parent=27 // pred_check
          %p170 = pneg %p37
        $region30: #{tpu_custom_call.1} parent=27 // pred_check_branch
          %172 = sbr.rel (%p170) target = $region32
        $region31: #{tpu_custom_call.1} parent=27 // pred_region
          %s173 = sand.u32 %s27, 1
          %s174 = scalar_lea.sflag [#allocation3], %s173
          %s175 = sand.u32 %s27, 1
          %s176 = smul.addr %s175, 64
          %s177 = scalar_lea.vmem [#allocation2], %s176
          %s179 = ssub.s32 1024, 1024
          %180 = vsyncadd %s174, %s179
          %s181 = smul.addr %s17, 8
          %s182 = smul.addr %s181, 128
          %s183 = scalar_lea.hbm %s0, %s182
          %s184 = sshll.u32 %s177, 4
          %s185 = int_to_ptr.vmem [resolvable:$true] %s184
          %190 = dma.hbm_to_vmem [thread:$0]  %s183, 1024, %s185, %s174, 512, 512, 32
        $region32: #{tpu_custom_call.1} parent=27 // pred_fallthru
          _
      $region28: #{tpu_custom_call.1} parent=5 // pred_fallthru
        _
      %p191 = scmp.le.s32.totalorder 1, %s17
      %p192 = scmp.lt.s32.totalorder %s17, 3
      %p193 = pnand %p191, %p192
      %p194 = pneg %p193
      // Predicated region
      $region33: #{tpu_custom_call.1} parent=5 // pred_check
        _
      $region34: #{tpu_custom_call.1} parent=5 // pred_check_branch
        %196 = sbr.rel (%p193) target = $region36
      $region35: #{tpu_custom_call.1} parent=5 // pred_region
        %s197 = ssub.s32 %s17, 1
        %s198 = sand.u32 %s30, 1
        %s199 = scalar_lea.sflag [#allocation3], %s198
        %s200 = sand.u32 %s30, 1
        %s201 = smul.addr %s200, 64
        %s202 = scalar_lea.vmem [#allocation2], %s201
        // Predicated region
        $region37: #{tpu_custom_call.1} parent=35 // pred_check
          %p203 = pneg %p43
        $region38: #{tpu_custom_call.1} parent=35 // pred_check_branch
          %205 = sbr.rel (%p203) target = $region40
        $region39: #{tpu_custom_call.1} parent=35 // pred_region
          %206 = dma.done %s199, 1024
        $region40: #{tpu_custom_call.1} parent=35 // pred_fallthru
          _
        // Predicated region
        $region41: #{tpu_custom_call.1} parent=35 // pred_check
          %p207 = pneg %p64
        $region42: #{tpu_custom_call.1} parent=35 // pred_check_branch
          %209 = sbr.rel (%p207) target = $region44
        $region43: #{tpu_custom_call.1} parent=35 // pred_region
          %210 = dma.done [#allocation6], 256
        $region44: #{tpu_custom_call.1} parent=35 // pred_fallthru
          _
        %s211 = sand.u32 %s30, 1
        %s212 = scalar_lea.sflag [#allocation3], %s211
        %s213 = sand.u32 %s30, 1
        %s214 = smul.addr %s213, 64
        %s215 = scalar_lea.vmem [#allocation2], %s214
        %p216 = pneg %p43
        %p217 = pneg %p40
        %p218 = pneg %p64
        %p219 = pneg %p61
        %p220 = pneg %p85
        %p221 = pneg %p82
        %p222 = pneg %p106
        %p223 = pneg %p103
        %p224 = pneg %p132
        %p225 = pneg %p129
        %s226 = sand.u32 %s119, 1
        %s227 = scalar_lea.sflag [#allocation4], %s226
        %s228 = sand.u32 %s119, 1
        %s229 = smul.addr %s228, 64
        %s230 = scalar_lea.vmem [#allocation7], %s229
        %v231 = vld [vmem:[%s202] sm:$0xff]
        %v232 = vld [vmem:[%s202 + $0x8] sm:$0xff]
        %v233 = vld [vmem:[%s202 + $0x10] sm:$0xff]
        %v234 = vld [vmem:[%s202 + $0x18] sm:$0xff]
        %v235 = vld [vmem:[%s202 + $0x20] sm:$0xff]
        %v236 = vld [vmem:[%s202 + $0x28] sm:$0xff]
        %v237 = vld [vmem:[%s202 + $0x30] sm:$0xff]
        %v238 = vld [vmem:[%s202 + $0x38] sm:$0xff]
        %v239 = vld [vmem:[#allocation5] sm:$0xff]
        %v240 = vld [vmem:[#allocation5 + $0x8] sm:$0xff]
        %vm241 = vcmask 130048
        %v243 = vsel %vm241, %v239, 0
        %v246 = vsel %vm241, %v240, 0
        %248 = vmatprep.subr.mxu0 %v232
        %249 = vmatpush1.msra.mxu0 %v231
        %250 = vmatprep.subr.mxu0 %v236
        %251 = vmatpush1.msra.mxu0 %v235
        %252 = vmatprep.subr.mxu0 0.0
        %253 = vmatpush1.msra.mxu0 0.0
        %254 = vmatprep.subr.mxu0 0.0
        %255 = vmatpush1.msra.mxu0 0.0
        %256 = vmatprep.subr.mxu0 0.0
        %257 = vmatpush1.msra.mxu0 0.0
        %258 = vmatprep.subr.mxu0 0.0
        %259 = vmatpush1.msra.mxu0 0.0
        %260 = vmatprep.subr.mxu0 0.0
        %261 = vmatpush1.msra.mxu0 0.0
        %262 = vmatprep.subr.mxu0 0.0
        %263 = vmatpush1.msra.mxu0 0.0
        %264 = vmatprep.subr.mxu0 0.0
        %265 = vmatpush1.msra.mxu0 0.0
        %266 = vmatprep.subr.mxu0 0.0
        %267 = vmatpush1.msra.mxu0 0.0
        %268 = vmatprep.subr.mxu0 0.0
        %269 = vmatpush1.msra.mxu0 0.0
        %270 = vmatprep.subr.mxu0 0.0
        %271 = vmatpush1.msra.mxu0 0.0
        %272 = vmatprep.subr.mxu0 0.0
        %273 = vmatpush1.msra.mxu0 0.0
        %274 = vmatprep.subr.mxu0 0.0
        %275 = vmatpush1.msra.mxu0 0.0
        %276 = vmatprep.subr.mxu0 0.0
        %277 = vmatpush1.msra.mxu0 0.0
        %278 = vmatprep.subr.mxu0 0.0
        %279 = vmatpush1.msra.mxu0 0.0
        %280 = vmatprep.subr.mxu0 0.0
        %281 = vmatpush1.msra.mxu0 0.0
        %282 = vmatprep.subr.mxu0 0.0
        %283 = vmatpush1.msra.mxu0 0.0
        %284 = vmatprep.subr.mxu0 0.0
        %285 = vmatpush1.msra.mxu0 0.0
        %286 = vmatprep.subr.mxu0 0.0
        %287 = vmatpush1.msra.mxu0 0.0
        %288 = vmatprep.subr.mxu0 0.0
        %289 = vmatpush1.msra.mxu0 0.0
        %290 = vmatprep.subr.mxu0 0.0
        %291 = vmatpush1.msra.mxu0 0.0
        %292 = vmatprep.subr.mxu0 0.0
        %293 = vmatpush1.msra.mxu0 0.0
        %294 = vmatprep.subr.mxu0 0.0
        %295 = vmatpush1.msra.mxu0 0.0
        %296 = vmatprep.subr.mxu0 0.0
        %297 = vmatpush1.msra.mxu0 0.0
        %298 = vmatprep.subr.mxu0 0.0
        %299 = vmatpush1.msra.mxu0 0.0
        %300 = vmatprep.subr.mxu0 0.0
        %301 = vmatpush1.msra.mxu0 0.0
        %302 = vmatprep.subr.mxu0 0.0
        %303 = vmatpush1.msra.mxu0 0.0
        %304 = vmatprep.subr.mxu0 0.0
        %305 = vmatpush1.msra.mxu0 0.0
        %306 = vmatprep.subr.mxu0 0.0
        %307 = vmatpush1.msra.mxu0 0.0
        %308 = vmatprep.subr.mxu0 0.0
        %309 = vmatpush1.msra.mxu0 0.0
        %310 = vmatprep.subr.mxu0 0.0
        %311 = vmatpush1.msra.mxu0 0.0
        %312 = vmatprep.mubr.f32.mxu0 0.0
        %313 = vmatmul.mubr.f32.gmra.mrb[0].mxu0 %v243
        %v314 = vpop.f32.mrb[0].mxu0
        %v315 = vadd.f32 0.0, %v314
        %v316 = vpop.f32.mrb[0].mxu0
        %v317 = vadd.f32 0.0, %v316
        %318 = vmatprep.mubr.f32.mxu0 0.0
        %319 = vmatmul.mubr.f32.gmra.mrb[0].mxu0 %v246
        %v320 = vpop.f32.mrb[0].mxu0
        %v321 = vadd.f32 0.0, %v320
        %v322 = vpop.f32.mrb[0].mxu0
        %v323 = vadd.f32 0.0, %v322
        %324 = vdwg.mxu0
        %325 = vmatprep.subr.mxu0 %v234
        %326 = vmatpush1.msra.mxu0 %v233
        %327 = vmatprep.subr.mxu0 %v238
        %328 = vmatpush1.msra.mxu0 %v237
        %329 = vmatprep.subr.mxu0 0.0
        %330 = vmatpush1.msra.mxu0 0.0
        %331 = vmatprep.subr.mxu0 0.0
        %332 = vmatpush1.msra.mxu0 0.0
        %333 = vmatprep.subr.mxu0 0.0
        %334 = vmatpush1.msra.mxu0 0.0
        %335 = vmatprep.subr.mxu0 0.0
        %336 = vmatpush1.msra.mxu0 0.0
        %337 = vmatprep.subr.mxu0 0.0
        %338 = vmatpush1.msra.mxu0 0.0
        %339 = vmatprep.subr.mxu0 0.0
        %340 = vmatpush1.msra.mxu0 0.0
        %341 = vmatprep.subr.mxu0 0.0
        %342 = vmatpush1.msra.mxu0 0.0
        %343 = vmatprep.subr.mxu0 0.0
        %344 = vmatpush1.msra.mxu0 0.0
        %345 = vmatprep.subr.mxu0 0.0
        %346 = vmatpush1.msra.mxu0 0.0
        %347 = vmatprep.subr.mxu0 0.0
        %348 = vmatpush1.msra.mxu0 0.0
        %349 = vmatprep.subr.mxu0 0.0
        %350 = vmatpush1.msra.mxu0 0.0
        %351 = vmatprep.subr.mxu0 0.0
        %352 = vmatpush1.msra.mxu0 0.0
        %353 = vmatprep.subr.mxu0 0.0
        %354 = vmatpush1.msra.mxu0 0.0
        %355 = vmatprep.subr.mxu0 0.0
        %356 = vmatpush1.msra.mxu0 0.0
        %357 = vmatprep.subr.mxu0 0.0
        %358 = vmatpush1.msra.mxu0 0.0
        %359 = vmatprep.subr.mxu0 0.0
        %360 = vmatpush1.msra.mxu0 0.0
        %361 = vmatprep.subr.mxu0 0.0
        %362 = vmatpush1.msra.mxu0 0.0
        %363 = vmatprep.subr.mxu0 0.0
        %364 = vmatpush1.msra.mxu0 0.0
        %365 = vmatprep.subr.mxu0 0.0
        %366 = vmatpush1.msra.mxu0 0.0
        %367 = vmatprep.subr.mxu0 0.0
        %368 = vmatpush1.msra.mxu0 0.0
        %369 = vmatprep.subr.mxu0 0.0
        %370 = vmatpush1.msra.mxu0 0.0
        %371 = vmatprep.subr.mxu0 0.0
        %372 = vmatpush1.msra.mxu0 0.0
        %373 = vmatprep.subr.mxu0 0.0
        %374 = vmatpush1.msra.mxu0 0.0
        %375 = vmatprep.subr.mxu0 0.0
        %376 = vmatpush1.msra.mxu0 0.0
        %377 = vmatprep.subr.mxu0 0.0
        %378 = vmatpush1.msra.mxu0 0.0
        %379 = vmatprep.subr.mxu0 0.0
        %380 = vmatpush1.msra.mxu0 0.0
        %381 = vmatprep.subr.mxu0 0.0
        %382 = vmatpush1.msra.mxu0 0.0
        %383 = vmatprep.subr.mxu0 0.0
        %384 = vmatpush1.msra.mxu0 0.0
        %385 = vmatprep.subr.mxu0 0.0
        %386 = vmatpush1.msra.mxu0 0.0
        %387 = vmatprep.subr.mxu0 0.0
        %388 = vmatpush1.msra.mxu0 0.0
        %389 = vmatprep.mubr.f32.mxu0 0.0
        %390 = vmatmul.mubr.f32.gmra.mrb[0].mxu0 %v243
        %v391 = vpop.f32.mrb[0].mxu0
        %v392 = vadd.f32 0.0, %v391
        %v393 = vpop.f32.mrb[0].mxu0
        %v394 = vadd.f32 0.0, %v393
        %395 = vmatprep.mubr.f32.mxu0 0.0
        %396 = vmatmul.mubr.f32.gmra.mrb[0].mxu0 %v246
        %v397 = vpop.f32.mrb[0].mxu0
        %v398 = vadd.f32 0.0, %v397
        %v399 = vpop.f32.mrb[0].mxu0
        %v400 = vadd.f32 0.0, %v399
        %401 = vdwg.mxu0
        %v402 = vadd.f32 %v315, %v317
        %v403 = vadd.f32 %v402, %v392
        %vm404 = vcmask 465920
        %v405 = vsel %vm404, %v394, 0.0
        %v406 = vadd.f32 %v403, %v405
        %407 = vadd.xlane.f32.xlu0 %v406
        %v408 = vpop.xlane.xlu0 %407
        %v409 = vadd.f32 %v321, %v323
        %v410 = vadd.f32 %v409, %v398
        %v411 = vsel %vm404, %v400, 0.0
        %v412 = vadd.f32 %v410, %v411
        %413 = vadd.xlane.f32.xlu0 %v412
        %v414 = vpop.xlane.xlu0 %413
        %v415 = vrcp.pop 441.0
        %v416 = vmul.f32 %v408, %v415
        %v417 = vmul.f32 %v414, %v415
        %v418 = vsub.f32 %v315, %v416
        %v419 = vsub.f32 %v317, %v416
        %v420 = vsub.f32 %v392, %v416
        %v421 = vsub.f32 %v394, %v416
        %v422 = vsub.f32 %v321, %v417
        %v423 = vsub.f32 %v323, %v417
        %v424 = vsub.f32 %v398, %v417
        %v425 = vsub.f32 %v400, %v417
        %v426 = vmul.f32 %v418, %v418
        %v427 = vmul.f32 %v419, %v419
        %v428 = vmul.f32 %v420, %v420
        %v429 = vmul.f32 %v421, %v421
        %v430 = vmul.f32 %v422, %v422
        %v431 = vmul.f32 %v423, %v423
        %v432 = vmul.f32 %v424, %v424
        %v433 = vmul.f32 %v425, %v425
        %v434 = vadd.f32 %v426, %v427
        %v435 = vadd.f32 %v434, %v428
        %v436 = vsel %vm404, %v429, 0.0
        %v437 = vadd.f32 %v435, %v436
        %438 = vadd.xlane.f32.xlu0 %v437
        %v439 = vpop.xlane.xlu0 %438
        %v440 = vadd.f32 %v430, %v431
        %v441 = vadd.f32 %v440, %v432
        %v442 = vsel %vm404, %v433, 0.0
        %v443 = vadd.f32 %v441, %v442
        %444 = vadd.xlane.f32.xlu0 %v443
        %v445 = vpop.xlane.xlu0 %444
        %v446 = vmul.f32 %v439, %v415
        %v447 = vmul.f32 %v445, %v415
        %v448 = vadd.f32 %v446, 1e-06
        %v449 = vadd.f32 %v447, 1e-06
        %v450 = vrsqrt.pop %v448
        %v451 = vrsqrt.pop %v449
        %v452 = vmul.f32 %v418, %v450
        %v453 = vmul.f32 %v419, %v450
        %v454 = vmul.f32 %v420, %v450
        %v455 = vmul.f32 %v421, %v450
        %v456 = vmul.f32 %v422, %v451
        %v457 = vmul.f32 %v423, %v451
        %v458 = vmul.f32 %v424, %v451
        %v459 = vmul.f32 %v425, %v451
        %v460 = vld [vmem:[%s2] sm:$0xf]
        %v462 = vlaneseq
        %v463 = vshrl.u32 %v462, 7
        %v464 = vsub.s32 0, %v463
        %v465 = vrot.slane %v460, %v464
        %v466 = vlaneseq
        %v467 = vshrl.u32 %v466, 7
        %v468 = vsub.s32 1, %v467
        %v469 = vrot.slane %v460, %v468
        %v470 = vlaneseq
        %v471 = vshrl.u32 %v470, 7
        %v472 = vsub.s32 2, %v471
        %v473 = vrot.slane %v460, %v472
        %v474 = vlaneseq
        %v475 = vshrl.u32 %v474, 7
        %v476 = vsub.s32 3, %v475
        %v477 = vrot.slane %v460, %v476
        %v482 = vmul.f32 %v452, %v465
        %v483 = vmul.f32 %v453, %v469
        %v484 = vmul.f32 %v454, %v473
        %v485 = vmul.f32 %v455, %v477
        %v486 = vmul.f32 %v456, %v465
        %v487 = vmul.f32 %v457, %v469
        %v488 = vmul.f32 %v458, %v473
        %v489 = vmul.f32 %v459, %v477
        %v490 = vld [vmem:[%s3] sm:$0xf]
        %v492 = vlaneseq
        %v493 = vshrl.u32 %v492, 7
        %v494 = vsub.s32 0, %v493
        %v495 = vrot.slane %v490, %v494
        %v496 = vlaneseq
        %v497 = vshrl.u32 %v496, 7
        %v498 = vsub.s32 1, %v497
        %v499 = vrot.slane %v490, %v498
        %v500 = vlaneseq
        %v501 = vshrl.u32 %v500, 7
        %v502 = vsub.s32 2, %v501
        %v503 = vrot.slane %v490, %v502
        %v504 = vlaneseq
        %v505 = vshrl.u32 %v504, 7
        %v506 = vsub.s32 3, %v505
        %v507 = vrot.slane %v490, %v506
        %v512 = vadd.f32 %v482, %v495
        %v513 = vadd.f32 %v483, %v499
        %v514 = vadd.f32 %v484, %v503
        %v515 = vadd.f32 %v485, %v507
        %v516 = vadd.f32 %v486, %v495
        %v517 = vadd.f32 %v487, %v499
        %v518 = vadd.f32 %v488, %v503
        %v519 = vadd.f32 %v489, %v507
        %v520 = vmul.f32 %v512, 0.5
        %v521 = vmul.f32 %v513, 0.5
        %v522 = vmul.f32 %v514, 0.5
        %v523 = vmul.f32 %v515, 0.5
        %v524 = vmul.f32 %v516, 0.5
        %v525 = vmul.f32 %v517, 0.5
        %v526 = vmul.f32 %v518, 0.5
        %v527 = vmul.f32 %v519, 0.5
        %v528 = vmul.f32 %v512, 0.70710677
        %v529 = vmul.f32 %v513, 0.70710677
        %v530 = vmul.f32 %v514, 0.70710677
        %v531 = vmul.f32 %v515, 0.70710677
        %v532 = vmul.f32 %v516, 0.70710677
        %v533 = vmul.f32 %v517, 0.70710677
        %v534 = vmul.f32 %v518, 0.70710677
        %v535 = vmul.f32 %v519, 0.70710677
        %v536 = verf.f32.pop %v528
        %v537 = verf.f32.pop %v529
        %v538 = verf.f32.pop %v530
        %v539 = verf.f32.pop %v531
        %v540 = verf.f32.pop %v532
        %v541 = verf.f32.pop %v533
        %v542 = verf.f32.pop %v534
        %v543 = verf.f32.pop %v535
        %v544 = vadd.f32 %v536, 1.0
        %v545 = vadd.f32 %v537, 1.0
        %v546 = vadd.f32 %v538, 1.0
        %v547 = vadd.f32 %v539, 1.0
        %v548 = vadd.f32 %v540, 1.0
        %v549 = vadd.f32 %v541, 1.0
        %v550 = vadd.f32 %v542, 1.0
        %v551 = vadd.f32 %v543, 1.0
        %v552 = vmul.f32 %v520, %v544
        %v553 = vmul.f32 %v521, %v545
        %v554 = vmul.f32 %v522, %v546
        %v555 = vmul.f32 %v523, %v547
        %v556 = vmul.f32 %v524, %v548
        %v557 = vmul.f32 %v525, %v549
        %v558 = vmul.f32 %v526, %v550
        %v559 = vmul.f32 %v527, %v551
        %560 = vst [vmem:[%s230] sm:$0xff] %v552
        %561 = vst [vmem:[%s230 + $0x8] sm:$0xff] %v553
        %562 = vst [vmem:[%s230 + $0x10] sm:$0xff] %v554
        %563 = vst.msk [vmem:[%s230 + $0x18] sm:$0xff] %vm404, %v555
        %564 = vst [vmem:[%s230 + $0x20] sm:$0xff] %v556
        %565 = vst [vmem:[%s230 + $0x28] sm:$0xff] %v557
        %566 = vst [vmem:[%s230 + $0x30] sm:$0xff] %v558
        %567 = vst.msk [vmem:[%s230 + $0x38] sm:$0xff] %vm404, %v559
        %s568 = sand.u32 %s119, 1
        %s569 = scalar_lea.sflag [#allocation4], %s568
        %s570 = sand.u32 %s119, 1
        %s571 = smul.addr %s570, 64
        %s572 = scalar_lea.vmem [#allocation7], %s571
        // Predicated region
        $region45: #{tpu_custom_call.1} parent=35 // pred_check
          %p573 = pneg %p129
        $region46: #{tpu_custom_call.1} parent=35 // pred_check_branch
          %575 = sbr.rel (%p573) target = $region48
        $region47: #{tpu_custom_call.1} parent=35 // pred_region
          %s577 = ssub.s32 1024, 1024
          %578 = vsyncadd %s569, %s577
          %s579 = smul.addr %s22, 8
          %s580 = smul.addr %s579, 128
          %s581 = scalar_lea.hbm %s4, %s580
          %s582 = sshll.u32 %s572, 4
          %s583 = int_to_ptr.vmem [resolvable:$true] %s582
          %588 = dma.vmem_to_hbm [thread:$0]  %s583, 1024, %s581, %s569, 512, 512, 32
        $region48: #{tpu_custom_call.1} parent=35 // pred_fallthru
          _
      $region36: #{tpu_custom_call.1} parent=5 // pred_fallthru
        _
      %p589 = scmp.le.s32.totalorder 2, %s17
      // Predicated region
      $region49: #{tpu_custom_call.1} parent=5 // pred_check
        %p590 = pneg %p589
      $region50: #{tpu_custom_call.1} parent=5 // pred_check_branch
        %592 = sbr.rel (%p590) target = $region52
      $region51: #{tpu_custom_call.1} parent=5 // pred_region
        %s593 = ssub.s32 %s17, 2
        // Predicated region
        $region53: #{tpu_custom_call.1} parent=51 // pred_check
          %p594 = pneg %p135
        $region54: #{tpu_custom_call.1} parent=51 // pred_check_branch
          %596 = sbr.rel (%p594) target = $region56
        $region55: #{tpu_custom_call.1} parent=51 // pred_region
          %s597 = sand.u32 %s120, 1
          %s598 = scalar_lea.sflag [#allocation4], %s597
          %s599 = sand.u32 %s120, 1
          %s600 = smul.addr %s599, 64
          %s601 = scalar_lea.vmem [#allocation7], %s600
          %602 = dma.done %s598, 1024
        $region56: #{tpu_custom_call.1} parent=51 // pred_fallthru
          _
      $region52: #{tpu_custom_call.1} parent=5 // pred_fallthru
        _
    $region6: #{tpu_custom_call.1} parent=1 // loop_footer
      %s21 = sadd.s32 1, %s17
    $region7: #{tpu_custom_call.1} parent=1 // loop_footer_branch
      %16 = sbr.rel target = $region3
    $region8: #{tpu_custom_call.1} parent=1 // loop_exit
      _
    %603 = vsyncpa [#allocation3], 1
    %s604 = scalar_lea.sflag [#allocation3], 1
    %605 = vsyncpa %s604, 1
    %606 = vsyncpa [#allocation6], 1
    %607 = vsyncpa [#allocation4], 1
    %s608 = scalar_lea.sflag [#allocation4], 1
    %609 = vsyncpa %s608, 1

</llo_original>
